<compile_context>
chip_gen: v7x
topology: tpu7x:2x2x1
jax: 0.10.0
libtpu: 0.0.40
codegen_flags: <defaults>
</compile_context>

<pallas_src>
import numpy as np
import jax
import jax.numpy as jnp
from jax.experimental import pallas as pl
from jax.experimental.pallas import tpu as pltpu

BN_EPS = 1e-5
LRELU_SLOPE = 0.1
CPAD = 8            # channel dims padded to 8 sublanes
LANES = 128         # lane width of every tile
BIAS_COL, GAMMA_COL, BETA_COL = 125, 126, 127


def _make_layer_cfg(dim_input, dim_output, num_layers, filters, use_k3):
    """Returns list of (c_in, c_out, kernel_size) per conv block."""
    if len(filters) == 1:
        filters = filters * num_layers
    assert len(filters) == num_layers
    cfg, n_in = [], dim_input
    for i in range(num_layers):
        n_out = filters[i]
        if i == num_layers - 1:
            n_out = dim_output
        ks = 3 if (use_k3 and i % 2 == 0) else 1
        cfg.append((n_in, n_out, ks))
        n_in = n_out
    return cfg


def _pack_slab_np(weights, cfgs, reg_w, B, L):
    """Pack all parameters + constant matrices into one (R, 128) f32 slab.

    Built host-side with numpy, ONCE per model (not per call).
    Row layout (all blocks 8-row aligned):
      rows [8i, 8i+8)          : layer i stacked conv taps + bias/gamma/beta
      rows [8n, 8n+8)          : reg_W tiled across batch segments (cols [0,B*L))
      rows [R,  R+128)         : softmax batch-fold matrix  F[j,i]=1 iff j<BL, j%L==i%L
      rows [R+128, R+256)      : out_x selection matrix     S[j,b]=1 iff j<BL, j//L==b
    """
    BL = B * L
    n_layers = len(cfgs)
    rows = CPAD * n_layers + CPAD + 2 * LANES
    slab = np.zeros((rows, LANES), np.float32)
    for i, ((W, b, g, be), (ci, co, ks)) in enumerate(zip(weights, cfgs)):
        assert ci <= CPAD and co <= CPAD and ks in (1, 3)
        Wn = np.asarray(W, np.float32)
        r0 = CPAD * i
        for k in range(ks):
            slab[r0:r0 + co, CPAD * k:CPAD * k + ci] = Wn[:, :, k]
        slab[r0:r0 + co, BIAS_COL] = np.asarray(b, np.float32)
        slab[r0:r0 + co, GAMMA_COL] = np.asarray(g, np.float32)
        slab[r0:r0 + co, BETA_COL] = np.asarray(be, np.float32)
    r_rw = CPAD * n_layers
    rw = np.asarray(reg_w, np.float32)
    slab[r_rw:r_rw + rw.shape[0], :BL] = np.tile(rw, (1, B))
    j = np.arange(LANES)
    r_fold = r_rw + CPAD
    fold = ((j[:, None] % L) == (j[None, :] % L)) & (j[:, None] < BL)
    slab[r_fold:r_fold + LANES, :] = fold.astype(np.float32)
    r_sel = r_fold + LANES
    sel = ((j[:, None] // L) == j[None, :]) & (j[:, None] < BL)
    slab[r_sel:r_sel + LANES, :] = sel.astype(np.float32)
    return slab


def _build_kernel(sig_ks, off_ks, B, L):
    n_layers = len(sig_ks) + len(off_ks)
    BL = B * L
    dense = (BL == LANES)           # static: lanes fully occupied
    R_RW = CPAD * n_layers
    R_FOLD = R_RW + CPAD
    R_SEL = R_FOLD + LANES
    inv_n = 1.0 / float(BL)

    def kernel(x_ref, aux_ref, slab_ref, out_x_ref, out_aux_ref):
        # Hoisted lane masks (built once; batch segments live on lanes).
        lane_idx = jax.lax.broadcasted_iota(jnp.int32, (CPAD, LANES), 1)
        lane_pos = lane_idx % L
        has_left = lane_pos >= 1          # h[l-1] exists inside the segment
        has_right = lane_pos <= L - 2     # h[l+1] exists inside the segment
        if not dense:
            valid = lane_idx < BL         # lanes that carry real data

        def conv_bn_lrelu(h, i, ks):
            r0 = CPAD * i
            if ks == 1:
                w = slab_ref[r0:r0 + CPAD, 0:CPAD]                  # (8, 8)
                operand = h
            else:
                w = slab_ref[r0:r0 + CPAD, 0:3 * CPAD]              # (8, 24)
                h_l = jnp.where(has_left, pltpu.roll(h, shift=1, axis=1), 0.0)
                h_r = jnp.where(has_right,
                                pltpu.roll(h, shift=LANES - 1, axis=1), 0.0)
                # TODO(synk): v7x MRB could accumulate 3 separate (8,8) dots
                # instead of this concat; one-push form kept for v5e/v6e MRF.
                operand = jnp.concatenate([h_l, h, h_r], axis=0)    # (24, 128)
            # Conv1d (single MXU push) + bias
            y = jnp.dot(w, operand, preferred_element_type=jnp.float32)
            y = y + slab_ref[r0:r0 + CPAD, BIAS_COL:BIAS_COL + 1]
            # One-pass BatchNorm1d batch stats: two independent lane reductions
            ys = y if dense else jnp.where(valid, y, 0.0)
            s1 = jnp.sum(ys, axis=1, keepdims=True)
            s2 = jnp.sum(ys * ys, axis=1, keepdims=True)
            mean = s1 * inv_n
            var = s2 * inv_n - mean * mean
            gamma = slab_ref[r0:r0 + CPAD, GAMMA_COL:GAMMA_COL + 1]
            beta = slab_ref[r0:r0 + CPAD, BETA_COL:BETA_COL + 1]
            z = (y - mean) * (gamma * jax.lax.rsqrt(var + BN_EPS)) + beta
            act = jnp.maximum(z, LRELU_SLOPE * z)                   # LeakyReLU
            if not dense:
                act = jnp.where(valid, act, 0.0)   # keep padded lanes exactly 0
            return act

        h0 = x_ref[...]                                             # (8, 128)

        # --- signal branch ------------------------------------------------
        sig = h0
        for j, ks in enumerate(sig_ks):
            sig = conv_bn_lrelu(sig, j, ks)

        # softmax over the batch axis (= across the lane segments)
        if dense:
            # log2(B) roll-doubling tree for the per-group max
            m = sig
            s = L
            while s < LANES:
                m = jnp.maximum(m, pltpu.roll(m, shift=s, axis=1))
                s *= 2
        else:
            # padded lanes: single global (masked) max is a valid, stable shift
            m = jnp.max(jnp.where(valid, sig, -1e30))
        e = jnp.exp(sig - m)
        # denominator + broadcast-back as ONE MXU fold-matmul (rows >= BL are 0)
        fold = slab_ref[R_FOLD:R_FOLD + LANES, :]                   # (128, 128)
        den = jnp.dot(e, fold, preferred_element_type=jnp.float32)
        inv_den = pl.reciprocal(den, approx=True)
        inv_den = inv_den * (2.0 - den * inv_den)   # 1 Newton step -> f32 accuracy
        soft = e * inv_den

        # --- offset branch --------------------------------------------------
        off = h0
        for j, ks in enumerate(off_ks):
            off = conv_bn_lrelu(off, len(sig_ks) + j, ks)

        # --- outputs (both lane-dense full-width stores) ---------------------
        out_aux_ref[...] = aux_ref[...] + off                       # aux + off_x

        rw = slab_ref[R_RW:R_RW + CPAD, :]                          # (8, 128)
        sel = slab_ref[R_SEL:R_SEL + LANES, :]                      # (128, 128)
        # sum_l reg_W * sig_soft * off per batch segment, as ONE matmul
        out_x_ref[...] = jnp.dot(rw * soft * off, sel,
                                 preferred_element_type=jnp.float32)

    return kernel


def make_socnn_forward(sig_weights, off_weights, reg_w, sig_cfg, off_cfg, B, L):
    """Builds (once) the packed slab + kernel and returns a jitted forward fn."""
    dim_input = sig_cfg[0][0]
    dim_output = reg_w.shape[0]
    BL = B * L
    assert BL <= LANES, "TODO(synk): B*L > 128 needs a lane-tiled grid"

    slab = jnp.asarray(_pack_slab_np(list(sig_weights) + list(off_weights),
                                     list(sig_cfg) + list(off_cfg),
                                     reg_w, B, L))
    sig_ks = [ks for (_, _, ks) in sig_cfg]
    off_ks = [ks for (_, _, ks) in off_cfg]
    kernel = _build_kernel(sig_ks, off_ks, B, L)

    vmem = pl.BlockSpec(memory_space=pltpu.MemorySpace.VMEM)
    call = pl.pallas_call(
        kernel,
        out_shape=(jax.ShapeDtypeStruct((CPAD, LANES), jnp.float32),
                   jax.ShapeDtypeStruct((CPAD, LANES), jnp.float32)),
        in_specs=[vmem, vmem, vmem],
        out_specs=(vmem, vmem),
        input_output_aliases={1: 1},   # out_aux reuses the merged aux buffer
    )

    @jax.jit
    def forward(x, aux):
        # Fold batch into the lane axis, pad channels to 8 sublanes and lanes
        # to 128 (all plumbing fused inside this single jitted executable).
        x_m = jnp.zeros((CPAD, LANES), jnp.float32).at[:dim_input, :BL].set(
            jnp.transpose(x, (1, 0, 2)).reshape(dim_input, BL))
        aux_m = jnp.zeros((CPAD, LANES), jnp.float32).at[:dim_output, :BL].set(
            jnp.transpose(aux, (1, 0, 2)).reshape(dim_output, BL))
        out_x_pad, out_aux_m = call(x_m, aux_m, slab)
        out_x = out_x_pad[:dim_output, :B].T                        # (B, dim_out)
        out_aux = (out_aux_m[:dim_output, :BL]
                   .reshape(dim_output, B, L).transpose(1, 0, 2))   # (B, dim_out, L)
        return out_x, out_aux

    return forward


# ---------------------- pure-JAX reference -------------------------------
def socnn_reference(x, aux, sig_weights, off_weights, reg_w, sig_cfg, off_cfg):
    L = x.shape[-1]

    def block(h, W, b, g, be, ks):
        if ks == 1:
            y = jnp.einsum('oc,bcl->bol', W[:, :, 0], h)
        else:
            hp = jnp.pad(h, ((0, 0), (0, 0), (1, 1)))
            y = sum(jnp.einsum('oc,bcl->bol', W[:, :, k], hp[:, :, k:k + L])
                    for k in range(3))
        y = y + b[None, :, None]
        mean = jnp.mean(y, axis=(0, 2), keepdims=True)
        var = jnp.mean((y - mean) ** 2, axis=(0, 2), keepdims=True)
        y = (y - mean) * jax.lax.rsqrt(var + BN_EPS) * g[None, :, None] + be[None, :, None]
        return jnp.maximum(y, LRELU_SLOPE * y)

    h = x
    for (W, b, g, be), (_, _, ks) in zip(sig_weights, sig_cfg):
        h = block(h, W, b, g, be, ks)
    sig = jax.nn.softmax(h, axis=0)

    h2 = x
    for (W, b, g, be), (_, _, ks) in zip(off_weights, off_cfg):
        h2 = block(h2, W, b, g, be, ks)

    aux_out = aux + h2
    prod = sig * h2
    out = jnp.sum(reg_w[None] * prod, axis=2)
    return out, aux_out


if __name__ == "__main__":
    # FLAGS: num_sig=3, num_off=2, conv_sig=[8], conv_off=[8],
    #        len_input=16, len_output=1, dim_input=4, dim_output=4
    dim_input, dim_output, L = 4, 4, 16
    sig_cfg = _make_layer_cfg(dim_input, dim_output, 3, [8], use_k3=True)
    off_cfg = _make_layer_cfg(dim_input, dim_output, 2, [8], use_k3=False)

    key = jax.random.PRNGKey(0)

    def init_layer(key, ci, co, ks):
        k1, k2, k3, k4 = jax.random.split(key, 4)
        W = jax.random.normal(k1, (co, ci, ks), jnp.float32) / np.sqrt(ci * ks)
        b = 0.1 * jax.random.normal(k2, (co,), jnp.float32)
        g = 1.0 + 0.1 * jax.random.normal(k3, (co,), jnp.float32)
        be = 0.1 * jax.random.normal(k4, (co,), jnp.float32)
        return W, b, g, be

    keys = jax.random.split(key, len(sig_cfg) + len(off_cfg) + 1)
    sig_weights = [init_layer(keys[i], ci, co, ks)
                   for i, (ci, co, ks) in enumerate(sig_cfg)]
    off_weights = [init_layer(keys[len(sig_cfg) + i], ci, co, ks)
                   for i, (ci, co, ks) in enumerate(off_cfg)]
    reg_w = jax.random.normal(keys[-1], (dim_output, L), jnp.float32)

    # B=8 -> fully lane-dense (B*L = 128); B=2 -> padded/masked lane path.
    for B in (8, 2):
        kx, ka = jax.random.split(jax.random.fold_in(key, B))
        x = jax.random.normal(kx, (B, dim_input, L), jnp.float32)
        aux = jax.random.normal(ka, (B, dim_output, L), jnp.float32)

        fwd = make_socnn_forward(sig_weights, off_weights, reg_w,
                                 sig_cfg, off_cfg, B, L)
        out_x, out_aux = fwd(x, aux)
        jax.block_until_ready((out_x, out_aux))

        ref_x, ref_aux = socnn_reference(x, aux, sig_weights, off_weights,
                                         reg_w, sig_cfg, off_cfg)
        np.testing.assert_allclose(np.asarray(out_x), np.asarray(ref_x),
                                   rtol=1e-3, atol=1e-4)
        np.testing.assert_allclose(np.asarray(out_aux), np.asarray(ref_aux),
                                   rtol=1e-3, atol=1e-4)
    print("KERNEL_OK")
</pallas_src>

<mosaic_0001>
module attributes {stable_mosaic.version = 11 : i64} {
  func.func @kernel(%arg0: memref<8x128xf32, #tpu.memory_space<vmem>>, %arg1: memref<8x128xf32, #tpu.memory_space<vmem>>, %arg2: memref<304x128xf32, #tpu.memory_space<vmem>>, %arg3: memref<8x128xf32, #tpu.memory_space<vmem>>, %arg4: memref<8x128xf32, #tpu.memory_space<vmem>>) attributes {dimension_semantics = [], scalar_prefetch = 0 : i64, scratch_operands = 0 : i64, tpu.core_type = #tpu.core_type<tc>} {
    %0 = tpu.iota {dimensions = array<i32: 1>} : vector<8x128xi32>
    %c16_i32 = arith.constant 16 : i32
    %c0_i32 = arith.constant 0 : i32
    %1 = arith.cmpi eq, %c16_i32, %c0_i32 : i32
    %c1_i32 = arith.constant 1 : i32
    %2 = arith.select %1, %c1_i32, %c16_i32 : i32
    %3 = vector.broadcast %2 : i32 to vector<8x128xi32>
    %4 = arith.remsi %0, %3 : vector<8x128xi32>
    %c0_i32_0 = arith.constant 0 : i32
    %5 = vector.broadcast %c0_i32_0 : i32 to vector<8x128xi32>
    %6 = arith.cmpi ne, %4, %5 : vector<8x128xi32>
    %c0_i32_1 = arith.constant 0 : i32
    %7 = vector.broadcast %c0_i32_1 : i32 to vector<8x128xi32>
    %8 = arith.cmpi slt, %4, %7 : vector<8x128xi32>
    %c0_i32_2 = arith.constant 0 : i32
    %9 = arith.cmpi slt, %2, %c0_i32_2 : i32
    %10 = vector.broadcast %9 : i1 to vector<8x128xi1>
    %11 = vector.broadcast %10 : vector<8x128xi1> to vector<8x128xi1>
    %12 = arith.xori %8, %11 : vector<8x128xi1>
    %13 = arith.andi %12, %6 : vector<8x128xi1>
    %14 = vector.broadcast %2 : i32 to vector<8x128xi32>
    %15 = arith.addi %4, %14 : vector<8x128xi32>
    %16 = arith.select %13, %15, %4 : vector<8x128xi1>, vector<8x128xi32>
    %c1_i32_3 = arith.constant 1 : i32
    %17 = vector.broadcast %c1_i32_3 : i32 to vector<8x128xi32>
    %18 = arith.cmpi sge, %16, %17 : vector<8x128xi32>
    %c14_i32 = arith.constant 14 : i32
    %19 = vector.broadcast %c14_i32 : i32 to vector<8x128xi32>
    %20 = arith.cmpi sle, %16, %19 : vector<8x128xi32>
    %c0 = arith.constant 0 : index
    %c0_4 = arith.constant 0 : index
    %21 = vector.load %arg0[%c0, %c0_4] : memref<8x128xf32, #tpu.memory_space<vmem>>, vector<8x128xf32>
    %c0_5 = arith.constant 0 : index
    %c0_6 = arith.constant 0 : index
    %22 = vector.load %arg2[%c0_5, %c0_6] : memref<304x128xf32, #tpu.memory_space<vmem>>, vector<8x24xf32>
    %c1_i32_7 = arith.constant 1 : i32
    %23 = tpu.dynamic_rotate %21 by %c1_i32_7 dim 1 : vector<8x128xf32>, i32 -> vector<8x128xf32>
    %cst = arith.constant 0.000000e+00 : f32
    %24 = vector.broadcast %cst : f32 to vector<8x128xf32>
    %25 = arith.select %18, %23, %24 : vector<8x128xi1>, vector<8x128xf32>
    %c127_i32 = arith.constant 127 : i32
    %26 = tpu.dynamic_rotate %21 by %c127_i32 dim 1 : vector<8x128xf32>, i32 -> vector<8x128xf32>
    %cst_8 = arith.constant 0.000000e+00 : f32
    %27 = vector.broadcast %cst_8 : f32 to vector<8x128xf32>
    %28 = arith.select %20, %26, %27 : vector<8x128xi1>, vector<8x128xf32>
    %29 = tpu.concatenate %25, %21, %28 in 0 : vector<8x128xf32>, vector<8x128xf32>, vector<8x128xf32> -> vector<24x128xf32>
    %cst_9 = arith.constant dense<0.000000e+00> : vector<8x128xf32>
    %30 = tpu.matmul %22, %29, %cst_9 {dimension_numbers = #tpu.dot_dimension_numbers<[1], [0], [0], [1], [0, 0, 1, 1], [], []>} : vector<8x24xf32>, vector<24x128xf32>, vector<8x128xf32> -> vector<8x128xf32>
    %c0_10 = arith.constant 0 : index
    %c125 = arith.constant 125 : index
    %31 = vector.load %arg2[%c0_10, %c125] : memref<304x128xf32, #tpu.memory_space<vmem>>, vector<8x1xf32>
    %32 = vector.broadcast %31 : vector<8x1xf32> to vector<8x128xf32>
    %33 = arith.addf %30, %32 : vector<8x128xf32>
    %cst_11 = arith.constant dense<0.000000e+00> : vector<8xf32>
    %34 = vector.multi_reduction <add>, %33, %cst_11 [1] : vector<8x128xf32> to vector<8xf32>
    %35 = vector.shape_cast %34 : vector<8xf32> to vector<8x1xf32>
    %36 = arith.mulf %33, %33 : vector<8x128xf32>
    %cst_12 = arith.constant dense<0.000000e+00> : vector<8xf32>
    %37 = vector.multi_reduction <add>, %36, %cst_12 [1] : vector<8x128xf32> to vector<8xf32>
    %38 = vector.shape_cast %37 : vector<8xf32> to vector<8x1xf32>
    %cst_13 = arith.constant 7.812500e-03 : f32
    %39 = vector.broadcast %cst_13 : f32 to vector<8x1xf32>
    %40 = arith.mulf %35, %39 : vector<8x1xf32>
    %cst_14 = arith.constant 7.812500e-03 : f32
    %41 = vector.broadcast %cst_14 : f32 to vector<8x1xf32>
    %42 = arith.mulf %38, %41 : vector<8x1xf32>
    %43 = arith.mulf %40, %40 : vector<8x1xf32>
    %44 = arith.subf %42, %43 : vector<8x1xf32>
    %c0_15 = arith.constant 0 : index
    %c126 = arith.constant 126 : index
    %45 = vector.load %arg2[%c0_15, %c126] : memref<304x128xf32, #tpu.memory_space<vmem>>, vector<8x1xf32>
    %c0_16 = arith.constant 0 : index
    %c127 = arith.constant 127 : index
    %46 = vector.load %arg2[%c0_16, %c127] : memref<304x128xf32, #tpu.memory_space<vmem>>, vector<8x1xf32>
    %47 = vector.broadcast %40 : vector<8x1xf32> to vector<8x128xf32>
    %48 = arith.subf %33, %47 : vector<8x128xf32>
    %cst_17 = arith.constant 9.99999974E-6 : f32
    %49 = vector.broadcast %cst_17 : f32 to vector<8x1xf32>
    %50 = arith.addf %44, %49 : vector<8x1xf32>
    %51 = math.rsqrt %50 : vector<8x1xf32>
    %52 = arith.mulf %45, %51 : vector<8x1xf32>
    %53 = vector.broadcast %52 : vector<8x1xf32> to vector<8x128xf32>
    %54 = arith.mulf %48, %53 : vector<8x128xf32>
    %55 = vector.broadcast %46 : vector<8x1xf32> to vector<8x128xf32>
    %56 = arith.addf %54, %55 : vector<8x128xf32>
    %cst_18 = arith.constant 1.000000e-01 : f32
    %57 = vector.broadcast %cst_18 : f32 to vector<8x128xf32>
    %58 = arith.mulf %57, %56 : vector<8x128xf32>
    %59 = arith.maximumf %56, %58 : vector<8x128xf32>
    %c8 = arith.constant 8 : index
    %c0_19 = arith.constant 0 : index
    %60 = vector.load %arg2[%c8, %c0_19] : memref<304x128xf32, #tpu.memory_space<vmem>>, vector<8x8xf32>
    %cst_20 = arith.constant dense<0.000000e+00> : vector<8x128xf32>
    %61 = tpu.matmul %60, %59, %cst_20 {dimension_numbers = #tpu.dot_dimension_numbers<[1], [0], [0], [1], [0, 0, 1, 1], [], []>} : vector<8x8xf32>, vector<8x128xf32>, vector<8x128xf32> -> vector<8x128xf32>
    %c8_21 = arith.constant 8 : index
    %c125_22 = arith.constant 125 : index
    %62 = vector.load %arg2[%c8_21, %c125_22] : memref<304x128xf32, #tpu.memory_space<vmem>>, vector<8x1xf32>
    %63 = vector.broadcast %62 : vector<8x1xf32> to vector<8x128xf32>
    %64 = arith.addf %61, %63 : vector<8x128xf32>
    %cst_23 = arith.constant dense<0.000000e+00> : vector<8xf32>
    %65 = vector.multi_reduction <add>, %64, %cst_23 [1] : vector<8x128xf32> to vector<8xf32>
    %66 = vector.shape_cast %65 : vector<8xf32> to vector<8x1xf32>
    %67 = arith.mulf %64, %64 : vector<8x128xf32>
    %cst_24 = arith.constant dense<0.000000e+00> : vector<8xf32>
    %68 = vector.multi_reduction <add>, %67, %cst_24 [1] : vector<8x128xf32> to vector<8xf32>
    %69 = vector.shape_cast %68 : vector<8xf32> to vector<8x1xf32>
    %cst_25 = arith.constant 7.812500e-03 : f32
    %70 = vector.broadcast %cst_25 : f32 to vector<8x1xf32>
    %71 = arith.mulf %66, %70 : vector<8x1xf32>
    %cst_26 = arith.constant 7.812500e-03 : f32
    %72 = vector.broadcast %cst_26 : f32 to vector<8x1xf32>
    %73 = arith.mulf %69, %72 : vector<8x1xf32>
    %74 = arith.mulf %71, %71 : vector<8x1xf32>
    %75 = arith.subf %73, %74 : vector<8x1xf32>
    %c8_27 = arith.constant 8 : index
    %c126_28 = arith.constant 126 : index
    %76 = vector.load %arg2[%c8_27, %c126_28] : memref<304x128xf32, #tpu.memory_space<vmem>>, vector<8x1xf32>
    %c8_29 = arith.constant 8 : index
    %c127_30 = arith.constant 127 : index
    %77 = vector.load %arg2[%c8_29, %c127_30] : memref<304x128xf32, #tpu.memory_space<vmem>>, vector<8x1xf32>
    %78 = vector.broadcast %71 : vector<8x1xf32> to vector<8x128xf32>
    %79 = arith.subf %64, %78 : vector<8x128xf32>
    %cst_31 = arith.constant 9.99999974E-6 : f32
    %80 = vector.broadcast %cst_31 : f32 to vector<8x1xf32>
    %81 = arith.addf %75, %80 : vector<8x1xf32>
    %82 = math.rsqrt %81 : vector<8x1xf32>
    %83 = arith.mulf %76, %82 : vector<8x1xf32>
    %84 = vector.broadcast %83 : vector<8x1xf32> to vector<8x128xf32>
    %85 = arith.mulf %79, %84 : vector<8x128xf32>
    %86 = vector.broadcast %77 : vector<8x1xf32> to vector<8x128xf32>
    %87 = arith.addf %85, %86 : vector<8x128xf32>
    %cst_32 = arith.constant 1.000000e-01 : f32
    %88 = vector.broadcast %cst_32 : f32 to vector<8x128xf32>
    %89 = arith.mulf %88, %87 : vector<8x128xf32>
    %90 = arith.maximumf %87, %89 : vector<8x128xf32>
    %c16 = arith.constant 16 : index
    %c0_33 = arith.constant 0 : index
    %91 = vector.load %arg2[%c16, %c0_33] : memref<304x128xf32, #tpu.memory_space<vmem>>, vector<8x24xf32>
    %c1_i32_34 = arith.constant 1 : i32
    %92 = tpu.dynamic_rotate %90 by %c1_i32_34 dim 1 : vector<8x128xf32>, i32 -> vector<8x128xf32>
    %cst_35 = arith.constant 0.000000e+00 : f32
    %93 = vector.broadcast %cst_35 : f32 to vector<8x128xf32>
    %94 = arith.select %18, %92, %93 : vector<8x128xi1>, vector<8x128xf32>
    %c127_i32_36 = arith.constant 127 : i32
    %95 = tpu.dynamic_rotate %90 by %c127_i32_36 dim 1 : vector<8x128xf32>, i32 -> vector<8x128xf32>
    %cst_37 = arith.constant 0.000000e+00 : f32
    %96 = vector.broadcast %cst_37 : f32 to vector<8x128xf32>
    %97 = arith.select %20, %95, %96 : vector<8x128xi1>, vector<8x128xf32>
    %98 = tpu.concatenate %94, %90, %97 in 0 : vector<8x128xf32>, vector<8x128xf32>, vector<8x128xf32> -> vector<24x128xf32>
    %cst_38 = arith.constant dense<0.000000e+00> : vector<8x128xf32>
    %99 = tpu.matmul %91, %98, %cst_38 {dimension_numbers = #tpu.dot_dimension_numbers<[1], [0], [0], [1], [0, 0, 1, 1], [], []>} : vector<8x24xf32>, vector<24x128xf32>, vector<8x128xf32> -> vector<8x128xf32>
    %c16_39 = arith.constant 16 : index
    %c125_40 = arith.constant 125 : index
    %100 = vector.load %arg2[%c16_39, %c125_40] : memref<304x128xf32, #tpu.memory_space<vmem>>, vector<8x1xf32>
    %101 = vector.broadcast %100 : vector<8x1xf32> to vector<8x128xf32>
    %102 = arith.addf %99, %101 : vector<8x128xf32>
    %cst_41 = arith.constant dense<0.000000e+00> : vector<8xf32>
    %103 = vector.multi_reduction <add>, %102, %cst_41 [1] : vector<8x128xf32> to vector<8xf32>
    %104 = vector.shape_cast %103 : vector<8xf32> to vector<8x1xf32>
    %105 = arith.mulf %102, %102 : vector<8x128xf32>
    %cst_42 = arith.constant dense<0.000000e+00> : vector<8xf32>
    %106 = vector.multi_reduction <add>, %105, %cst_42 [1] : vector<8x128xf32> to vector<8xf32>
    %107 = vector.shape_cast %106 : vector<8xf32> to vector<8x1xf32>
    %cst_43 = arith.constant 7.812500e-03 : f32
    %108 = vector.broadcast %cst_43 : f32 to vector<8x1xf32>
    %109 = arith.mulf %104, %108 : vector<8x1xf32>
    %cst_44 = arith.constant 7.812500e-03 : f32
    %110 = vector.broadcast %cst_44 : f32 to vector<8x1xf32>
    %111 = arith.mulf %107, %110 : vector<8x1xf32>
    %112 = arith.mulf %109, %109 : vector<8x1xf32>
    %113 = arith.subf %111, %112 : vector<8x1xf32>
    %c16_45 = arith.constant 16 : index
    %c126_46 = arith.constant 126 : index
    %114 = vector.load %arg2[%c16_45, %c126_46] : memref<304x128xf32, #tpu.memory_space<vmem>>, vector<8x1xf32>
    %c16_47 = arith.constant 16 : index
    %c127_48 = arith.constant 127 : index
    %115 = vector.load %arg2[%c16_47, %c127_48] : memref<304x128xf32, #tpu.memory_space<vmem>>, vector<8x1xf32>
    %116 = vector.broadcast %109 : vector<8x1xf32> to vector<8x128xf32>
    %117 = arith.subf %102, %116 : vector<8x128xf32>
    %cst_49 = arith.constant 9.99999974E-6 : f32
    %118 = vector.broadcast %cst_49 : f32 to vector<8x1xf32>
    %119 = arith.addf %113, %118 : vector<8x1xf32>
    %120 = math.rsqrt %119 : vector<8x1xf32>
    %121 = arith.mulf %114, %120 : vector<8x1xf32>
    %122 = vector.broadcast %121 : vector<8x1xf32> to vector<8x128xf32>
    %123 = arith.mulf %117, %122 : vector<8x128xf32>
    %124 = vector.broadcast %115 : vector<8x1xf32> to vector<8x128xf32>
    %125 = arith.addf %123, %124 : vector<8x128xf32>
    %cst_50 = arith.constant 1.000000e-01 : f32
    %126 = vector.broadcast %cst_50 : f32 to vector<8x128xf32>
    %127 = arith.mulf %126, %125 : vector<8x128xf32>
    %128 = arith.maximumf %125, %127 : vector<8x128xf32>
    %c16_i32_51 = arith.constant 16 : i32
    %129 = tpu.dynamic_rotate %128 by %c16_i32_51 dim 1 : vector<8x128xf32>, i32 -> vector<8x128xf32>
    %130 = arith.maximumf %128, %129 : vector<8x128xf32>
    %c32_i32 = arith.constant 32 : i32
    %131 = tpu.dynamic_rotate %130 by %c32_i32 dim 1 : vector<8x128xf32>, i32 -> vector<8x128xf32>
    %132 = arith.maximumf %130, %131 : vector<8x128xf32>
    %c64_i32 = arith.constant 64 : i32
    %133 = tpu.dynamic_rotate %132 by %c64_i32 dim 1 : vector<8x128xf32>, i32 -> vector<8x128xf32>
    %134 = arith.maximumf %132, %133 : vector<8x128xf32>
    %135 = arith.subf %128, %134 : vector<8x128xf32>
    %136 = math.exp %135 : vector<8x128xf32>
    %c48 = arith.constant 48 : index
    %c0_52 = arith.constant 0 : index
    %137 = vector.load %arg2[%c48, %c0_52] : memref<304x128xf32, #tpu.memory_space<vmem>>, vector<128x128xf32>
    %cst_53 = arith.constant dense<0.000000e+00> : vector<8x128xf32>
    %138 = tpu.matmul %136, %137, %cst_53 {dimension_numbers = #tpu.dot_dimension_numbers<[1], [0], [0], [1], [0, 0, 1, 1], [], []>} : vector<8x128xf32>, vector<128x128xf32>, vector<8x128xf32> -> vector<8x128xf32>
    %139 = tpu.reciprocal %138 {approx = true} : vector<8x128xf32> -> vector<8x128xf32>
    %140 = arith.mulf %138, %139 : vector<8x128xf32>
    %cst_54 = arith.constant 2.000000e+00 : f32
    %141 = vector.broadcast %cst_54 : f32 to vector<8x128xf32>
    %142 = arith.subf %141, %140 : vector<8x128xf32>
    %143 = arith.mulf %139, %142 : vector<8x128xf32>
    %144 = arith.mulf %136, %143 : vector<8x128xf32>
    %c24 = arith.constant 24 : index
    %c0_55 = arith.constant 0 : index
    %145 = vector.load %arg2[%c24, %c0_55] : memref<304x128xf32, #tpu.memory_space<vmem>>, vector<8x8xf32>
    %cst_56 = arith.constant dense<0.000000e+00> : vector<8x128xf32>
    %146 = tpu.matmul %145, %21, %cst_56 {dimension_numbers = #tpu.dot_dimension_numbers<[1], [0], [0], [1], [0, 0, 1, 1], [], []>} : vector<8x8xf32>, vector<8x128xf32>, vector<8x128xf32> -> vector<8x128xf32>
    %c24_57 = arith.constant 24 : index
    %c125_58 = arith.constant 125 : index
    %147 = vector.load %arg2[%c24_57, %c125_58] : memref<304x128xf32, #tpu.memory_space<vmem>>, vector<8x1xf32>
    %148 = vector.broadcast %147 : vector<8x1xf32> to vector<8x128xf32>
    %149 = arith.addf %146, %148 : vector<8x128xf32>
    %cst_59 = arith.constant dense<0.000000e+00> : vector<8xf32>
    %150 = vector.multi_reduction <add>, %149, %cst_59 [1] : vector<8x128xf32> to vector<8xf32>
    %151 = vector.shape_cast %150 : vector<8xf32> to vector<8x1xf32>
    %152 = arith.mulf %149, %149 : vector<8x128xf32>
    %cst_60 = arith.constant dense<0.000000e+00> : vector<8xf32>
    %153 = vector.multi_reduction <add>, %152, %cst_60 [1] : vector<8x128xf32> to vector<8xf32>
    %154 = vector.shape_cast %153 : vector<8xf32> to vector<8x1xf32>
    %cst_61 = arith.constant 7.812500e-03 : f32
    %155 = vector.broadcast %cst_61 : f32 to vector<8x1xf32>
    %156 = arith.mulf %151, %155 : vector<8x1xf32>
    %cst_62 = arith.constant 7.812500e-03 : f32
    %157 = vector.broadcast %cst_62 : f32 to vector<8x1xf32>
    %158 = arith.mulf %154, %157 : vector<8x1xf32>
    %159 = arith.mulf %156, %156 : vector<8x1xf32>
    %160 = arith.subf %158, %159 : vector<8x1xf32>
    %c24_63 = arith.constant 24 : index
    %c126_64 = arith.constant 126 : index
    %161 = vector.load %arg2[%c24_63, %c126_64] : memref<304x128xf32, #tpu.memory_space<vmem>>, vector<8x1xf32>
    %c24_65 = arith.constant 24 : index
    %c127_66 = arith.constant 127 : index
    %162 = vector.load %arg2[%c24_65, %c127_66] : memref<304x128xf32, #tpu.memory_space<vmem>>, vector<8x1xf32>
    %163 = vector.broadcast %156 : vector<8x1xf32> to vector<8x128xf32>
    %164 = arith.subf %149, %163 : vector<8x128xf32>
    %cst_67 = arith.constant 9.99999974E-6 : f32
    %165 = vector.broadcast %cst_67 : f32 to vector<8x1xf32>
    %166 = arith.addf %160, %165 : vector<8x1xf32>
    %167 = math.rsqrt %166 : vector<8x1xf32>
    %168 = arith.mulf %161, %167 : vector<8x1xf32>
    %169 = vector.broadcast %168 : vector<8x1xf32> to vector<8x128xf32>
    %170 = arith.mulf %164, %169 : vector<8x128xf32>
    %171 = vector.broadcast %162 : vector<8x1xf32> to vector<8x128xf32>
    %172 = arith.addf %170, %171 : vector<8x128xf32>
    %cst_68 = arith.constant 1.000000e-01 : f32
    %173 = vector.broadcast %cst_68 : f32 to vector<8x128xf32>
    %174 = arith.mulf %173, %172 : vector<8x128xf32>
    %175 = arith.maximumf %172, %174 : vector<8x128xf32>
    %c32 = arith.constant 32 : index
    %c0_69 = arith.constant 0 : index
    %176 = vector.load %arg2[%c32, %c0_69] : memref<304x128xf32, #tpu.memory_space<vmem>>, vector<8x8xf32>
    %cst_70 = arith.constant dense<0.000000e+00> : vector<8x128xf32>
    %177 = tpu.matmul %176, %175, %cst_70 {dimension_numbers = #tpu.dot_dimension_numbers<[1], [0], [0], [1], [0, 0, 1, 1], [], []>} : vector<8x8xf32>, vector<8x128xf32>, vector<8x128xf32> -> vector<8x128xf32>
    %c32_71 = arith.constant 32 : index
    %c125_72 = arith.constant 125 : index
    %178 = vector.load %arg2[%c32_71, %c125_72] : memref<304x128xf32, #tpu.memory_space<vmem>>, vector<8x1xf32>
    %179 = vector.broadcast %178 : vector<8x1xf32> to vector<8x128xf32>
    %180 = arith.addf %177, %179 : vector<8x128xf32>
    %cst_73 = arith.constant dense<0.000000e+00> : vector<8xf32>
    %181 = vector.multi_reduction <add>, %180, %cst_73 [1] : vector<8x128xf32> to vector<8xf32>
    %182 = vector.shape_cast %181 : vector<8xf32> to vector<8x1xf32>
    %183 = arith.mulf %180, %180 : vector<8x128xf32>
    %cst_74 = arith.constant dense<0.000000e+00> : vector<8xf32>
    %184 = vector.multi_reduction <add>, %183, %cst_74 [1] : vector<8x128xf32> to vector<8xf32>
    %185 = vector.shape_cast %184 : vector<8xf32> to vector<8x1xf32>
    %cst_75 = arith.constant 7.812500e-03 : f32
    %186 = vector.broadcast %cst_75 : f32 to vector<8x1xf32>
    %187 = arith.mulf %182, %186 : vector<8x1xf32>
    %cst_76 = arith.constant 7.812500e-03 : f32
    %188 = vector.broadcast %cst_76 : f32 to vector<8x1xf32>
    %189 = arith.mulf %185, %188 : vector<8x1xf32>
    %190 = arith.mulf %187, %187 : vector<8x1xf32>
    %191 = arith.subf %189, %190 : vector<8x1xf32>
    %c32_77 = arith.constant 32 : index
    %c126_78 = arith.constant 126 : index
    %192 = vector.load %arg2[%c32_77, %c126_78] : memref<304x128xf32, #tpu.memory_space<vmem>>, vector<8x1xf32>
    %c32_79 = arith.constant 32 : index
    %c127_80 = arith.constant 127 : index
    %193 = vector.load %arg2[%c32_79, %c127_80] : memref<304x128xf32, #tpu.memory_space<vmem>>, vector<8x1xf32>
    %194 = vector.broadcast %187 : vector<8x1xf32> to vector<8x128xf32>
    %195 = arith.subf %180, %194 : vector<8x128xf32>
    %cst_81 = arith.constant 9.99999974E-6 : f32
    %196 = vector.broadcast %cst_81 : f32 to vector<8x1xf32>
    %197 = arith.addf %191, %196 : vector<8x1xf32>
    %198 = math.rsqrt %197 : vector<8x1xf32>
    %199 = arith.mulf %192, %198 : vector<8x1xf32>
    %200 = vector.broadcast %199 : vector<8x1xf32> to vector<8x128xf32>
    %201 = arith.mulf %195, %200 : vector<8x128xf32>
    %202 = vector.broadcast %193 : vector<8x1xf32> to vector<8x128xf32>
    %203 = arith.addf %201, %202 : vector<8x128xf32>
    %cst_82 = arith.constant 1.000000e-01 : f32
    %204 = vector.broadcast %cst_82 : f32 to vector<8x128xf32>
    %205 = arith.mulf %204, %203 : vector<8x128xf32>
    %206 = arith.maximumf %203, %205 : vector<8x128xf32>
    %c0_83 = arith.constant 0 : index
    %c0_84 = arith.constant 0 : index
    %207 = vector.load %arg1[%c0_83, %c0_84] : memref<8x128xf32, #tpu.memory_space<vmem>>, vector<8x128xf32>
    %208 = arith.addf %207, %206 : vector<8x128xf32>
    %c0_85 = arith.constant 0 : index
    %c0_86 = arith.constant 0 : index
    %209 = vector.load %arg4[%c0_85, %c0_86] : memref<8x128xf32, #tpu.memory_space<vmem>>, vector<8x128xf32>
    tpu.vector_store %arg4[%c0_85, %c0_86], %208 {strides = array<i32>} : memref<8x128xf32, #tpu.memory_space<vmem>>, vector<8x128xf32>,
    %c40 = arith.constant 40 : index
    %c0_87 = arith.constant 0 : index
    %210 = vector.load %arg2[%c40, %c0_87] : memref<304x128xf32, #tpu.memory_space<vmem>>, vector<8x128xf32>
    %c176 = arith.constant 176 : index
    %c0_88 = arith.constant 0 : index
    %211 = vector.load %arg2[%c176, %c0_88] : memref<304x128xf32, #tpu.memory_space<vmem>>, vector<128x128xf32>
    %212 = arith.mulf %210, %144 : vector<8x128xf32>
    %213 = arith.mulf %212, %206 : vector<8x128xf32>
    %cst_89 = arith.constant dense<0.000000e+00> : vector<8x128xf32>
    %214 = tpu.matmul %213, %211, %cst_89 {dimension_numbers = #tpu.dot_dimension_numbers<[1], [0], [0], [1], [0, 0, 1, 1], [], []>} : vector<8x128xf32>, vector<128x128xf32>, vector<8x128xf32> -> vector<8x128xf32>
    %c0_90 = arith.constant 0 : index
    %c0_91 = arith.constant 0 : index
    %215 = vector.load %arg3[%c0_90, %c0_91] : memref<8x128xf32, #tpu.memory_space<vmem>>, vector<8x128xf32>
    tpu.vector_store %arg3[%c0_90, %c0_91], %214 {strides = array<i32>} : memref<8x128xf32, #tpu.memory_space<vmem>>, vector<8x128xf32>,
    return
  }
}

</mosaic_0001>

<llo_original>
// kernel: forward.1
$region0: #{forward.1}
  #allocation0 [shape = 'u32[]', space=smem, size = 0x4, offset = 0x4, fixed_abs, tag = 'smem constant byte address 0x4 - core index']
  #allocation1 [shape = 'u32[144,128]{1,0:T(1,128)}', space=vmem, size = 0x12000, scoped, tag = 'internal scratch']
  %s0 = inlined_call_operand.vmem [shape: f32[8,128], index: 0, kind: input, shape index: {}]
  %s1 = inlined_call_operand.vmem [shape: f32[8,128], index: 1, kind: input, shape index: {}, may-alias: {1,4}]
  %s2 = inlined_call_operand.hbm [shape: f32[304,128], index: 2, kind: input, shape index: {}]
  %s3 = inlined_call_operand.vmem [shape: f32[8,128], index: 3, kind: output, shape index: {0}]
  %s4 = inlined_call_operand.vmem [shape: f32[8,128], index: 4, kind: output, shape index: {1}, may-alias: {1,4}]
  %5 = xla_tuple %s3, %s4
  %s6 = sld [smem:[#allocation0]]
  $region34: #{forward.1} parent=0
    _
  %s8 = ssub.s32 1, %s6
  %s9 = scalar_select 0, %s8, %s6
  $region1: #{forward.1} parent=0
    #allocation2 [shape = 'u8[155648]{0}', space=vmem, size = 0x26000, scoped, tag = 'input window, operand 2, single buffered']
    #allocation3 [shape = 's32[1]{0}', space=sflag, size = 0x4, scoped, tag = 'scoped memory for forward.1']
    %10 = vsyncpa [#allocation3], 0
    // Predicated region
    $region2: #{forward.1} parent=1 // pred_check
      _
    $region3: #{forward.1} parent=1 // pred_check_branch
      %12 = sbr.rel (0) target = $region5
    $region4: #{forward.1} parent=1 // pred_region
      _
    $region5: #{forward.1} parent=1 // pred_fallthru
      _
    // Predicated region
    $region6: #{forward.1} parent=1 // pred_check
      _
    $region7: #{forward.1} parent=1 // pred_check_branch
      %14 = sbr.rel (0) target = $region9
    $region8: #{forward.1} parent=1 // pred_region
      _
    $region9: #{forward.1} parent=1 // pred_fallthru
      _
    // Predicated region
    $region10: #{forward.1} parent=1 // pred_check
      _
    $region11: #{forward.1} parent=1 // pred_check_branch
      %16 = sbr.rel (0) target = $region13
    $region12: #{forward.1} parent=1 // pred_region
      %s18 = ssub.s32 4864, 4864
      %19 = vsyncadd [#allocation3], %s18
      %s20 = sshll.u32 [#allocation2], 4
      %s21 = int_to_ptr.vmem [resolvable:$true] %s20
      %26 = dma.hbm_to_vmem [thread:$0]  %s2, 4864, %s21, [#allocation3], 128, 128, 8
    $region13: #{forward.1} parent=1 // pred_fallthru
      _
    // Predicated region
    $region14: #{forward.1} parent=1 // pred_check
      _
    $region15: #{forward.1} parent=1 // pred_check_branch
      %28 = sbr.rel (0) target = $region17
    $region16: #{forward.1} parent=1 // pred_region
      %29 = dma.done [#allocation3], 4864
    $region17: #{forward.1} parent=1 // pred_fallthru
      _
    %v30 = vlaneseq
    %v31 = vand.u32 %v30, 127
    %vm32 = vcmp.lt.s32.totalorder %v31, 0
    %v33 = vsub.s32 0, %v31
    %v34 = vsel %vm32, %v33, %v31
    %v35 = vshrl.u32 %v34, 4
    %v36 = vand.u32 %v34, 15
    %v37 = vsub.s32 0, %v36
    %v38 = vsel %vm32, %v37, %v36
    %vm39 = vcmp.ne.s32.totalorder %v38, 0
    %vm40 = vcmp.lt.s32.totalorder %v38, 0
    %vm41 = vmand %vm40, %vm39
    %v42 = vadd.s32 %v38, 16
    %v43 = vsel %vm41, %v42, %v38
    %vm44 = vcmp.ge.s32.totalorder %v43, 1
    %vm45 = vcmp.le.s32.totalorder %v43, 14
    %v46 = vld [vmem:[%s0] sm:$0xff]
    %v47 = vld [vmem:[#allocation2] sm:$0xff]
    %48 = vrot.lane.b32.xlu0 %v46, 1
    %v49 = vpop.permute.xlu0 %48
    %v50 = vsel %vm44, %v49, 0.0
    %51 = vrot.lane.b32.xlu0 %v46, 127
    %v52 = vpop.permute.xlu0 %51
    %v53 = vsel %vm45, %v52, 0.0
    %55 = vset.pattern.permute.xlu0 125
    %56 = vperm.xlu0 %55, %v47
    %v57 = vpop.permute.xlu0 %56
    %vm59 = vcmask 195584
    %v60 = vsel %vm59, %v47, 0
    %62 = vmatprep.subr.mxu0 0.0
    %63 = vmatpush1.msra.mxu0 %v50
    %64 = vmatprep.subr.mxu0 0.0
    %65 = vmatpush1.msra.mxu0 %v46
    %66 = vmatprep.subr.mxu0 0.0
    %67 = vmatpush1.msra.mxu0 %v53
    %68 = vmatprep.subr.mxu0 0.0
    %69 = vmatpush1.msra.mxu0 0.0
    %70 = vmatprep.subr.mxu0 0.0
    %71 = vmatpush1.msra.mxu0 0.0
    %72 = vmatprep.subr.mxu0 0.0
    %73 = vmatpush1.msra.mxu0 0.0
    %74 = vmatprep.subr.mxu0 0.0
    %75 = vmatpush1.msra.mxu0 0.0
    %76 = vmatprep.subr.mxu0 0.0
    %77 = vmatpush1.msra.mxu0 0.0
    %78 = vmatprep.subr.mxu0 0.0
    %79 = vmatpush1.msra.mxu0 0.0
    %80 = vmatprep.subr.mxu0 0.0
    %81 = vmatpush1.msra.mxu0 0.0
    %82 = vmatprep.subr.mxu0 0.0
    %83 = vmatpush1.msra.mxu0 0.0
    %84 = vmatprep.subr.mxu0 0.0
    %85 = vmatpush1.msra.mxu0 0.0
    %86 = vmatprep.subr.mxu0 0.0
    %87 = vmatpush1.msra.mxu0 0.0
    %88 = vmatprep.subr.mxu0 0.0
    %89 = vmatpush1.msra.mxu0 0.0
    %90 = vmatprep.subr.mxu0 0.0
    %91 = vmatpush1.msra.mxu0 0.0
    %92 = vmatprep.subr.mxu0 0.0
    %93 = vmatpush1.msra.mxu0 0.0
    %94 = vmatprep.subr.mxu0 0.0
    %95 = vmatpush1.msra.mxu0 0.0
    %96 = vmatprep.subr.mxu0 0.0
    %97 = vmatpush1.msra.mxu0 0.0
    %98 = vmatprep.subr.mxu0 0.0
    %99 = vmatpush1.msra.mxu0 0.0
    %100 = vmatprep.subr.mxu0 0.0
    %101 = vmatpush1.msra.mxu0 0.0
    %102 = vmatprep.subr.mxu0 0.0
    %103 = vmatpush1.msra.mxu0 0.0
    %104 = vmatprep.subr.mxu0 0.0
    %105 = vmatpush1.msra.mxu0 0.0
    %106 = vmatprep.subr.mxu0 0.0
    %107 = vmatpush1.msra.mxu0 0.0
    %108 = vmatprep.subr.mxu0 0.0
    %109 = vmatpush1.msra.mxu0 0.0
    %110 = vmatprep.subr.mxu0 0.0
    %111 = vmatpush1.msra.mxu0 0.0
    %112 = vmatprep.subr.mxu0 0.0
    %113 = vmatpush1.msra.mxu0 0.0
    %114 = vmatprep.subr.mxu0 0.0
    %115 = vmatpush1.msra.mxu0 0.0
    %116 = vmatprep.subr.mxu0 0.0
    %117 = vmatpush1.msra.mxu0 0.0
    %118 = vmatprep.subr.mxu0 0.0
    %119 = vmatpush1.msra.mxu0 0.0
    %120 = vmatprep.subr.mxu0 0.0
    %121 = vmatpush1.msra.mxu0 0.0
    %122 = vmatprep.subr.mxu0 0.0
    %123 = vmatpush1.msra.mxu0 0.0
    %124 = vmatprep.subr.mxu0 0.0
    %125 = vmatpush1.msra.mxu0 0.0
    %126 = vmatprep.mubr.f32.mxu0 0.0
    %127 = vmatmul.mubr.f32.gmra.mrb[0].mxu0 %v60
    %v128 = vpop.f32.mrb[0].mxu0
    %v129 = vadd.f32 %v57, %v128
    %v130 = vpop.f32.mrb[0].mxu0
    %131 = vdwg.mxu0
    %132 = vadd.xlane.f32.xlu0 %v129
    %v133 = vpop.xlane.xlu0 %132
    %v134 = vmul.f32 %v129, %v129
    %135 = vadd.xlane.f32.xlu0 %v134
    %v136 = vpop.xlane.xlu0 %135
    %v137 = vmul.f32 %v133, 0.0078125
    %v138 = vmul.f32 %v136, 0.0078125
    %v139 = vmul.f32 %v137, %v137
    %v140 = vsub.f32 %v138, %v139
    %v141 = vsub.f32 %v129, %v137
    %v142 = vadd.f32 %v140, 1e-05
    %v143 = vrsqrt.pop %v142
    %v144 = vmul.f32 %v47, %v143
    %146 = vset.pattern.permute.xlu0 126
    %147 = vperm.xlu0 %146, %v144
    %v148 = vpop.permute.xlu0 %147
    %v150 = vmul.f32 %v141, %v148
    %151 = vset.pattern.permute.xlu0 127
    %152 = vperm.xlu0 %151, %v47
    %v153 = vpop.permute.xlu0 %152
    %v155 = vadd.f32 %v150, %v153
    %v156 = vmul.f32 %v155, 0.1
    %v157 = vmax.f32 %v155, %v156
    %v158 = vld [vmem:[#allocation2 + $0x8] sm:$0xff]
    %160 = vset.pattern.permute.xlu0 125
    %161 = vperm.xlu0 %160, %v158
    %v162 = vpop.permute.xlu0 %161
    %vm164 = vcmask 64512
    %v165 = vsel %vm164, %v158, 0
    %167 = vmatprep.subr.mxu0 0.0
    %168 = vmatpush1.msra.mxu0 %v157
    %169 = vmatprep.subr.mxu0 0.0
    %170 = vmatpush1.msra.mxu0 0.0
    %171 = vmatprep.subr.mxu0 0.0
    %172 = vmatpush1.msra.mxu0 0.0
    %173 = vmatprep.subr.mxu0 0.0
    %174 = vmatpush1.msra.mxu0 0.0
    %175 = vmatprep.subr.mxu0 0.0
    %176 = vmatpush1.msra.mxu0 0.0
    %177 = vmatprep.subr.mxu0 0.0
    %178 = vmatpush1.msra.mxu0 0.0
    %179 = vmatprep.subr.mxu0 0.0
    %180 = vmatpush1.msra.mxu0 0.0
    %181 = vmatprep.subr.mxu0 0.0
    %182 = vmatpush1.msra.mxu0 0.0
    %183 = vmatprep.subr.mxu0 0.0
    %184 = vmatpush1.msra.mxu0 0.0
    %185 = vmatprep.subr.mxu0 0.0
    %186 = vmatpush1.msra.mxu0 0.0
    %187 = vmatprep.subr.mxu0 0.0
    %188 = vmatpush1.msra.mxu0 0.0
    %189 = vmatprep.subr.mxu0 0.0
    %190 = vmatpush1.msra.mxu0 0.0
    %191 = vmatprep.subr.mxu0 0.0
    %192 = vmatpush1.msra.mxu0 0.0
    %193 = vmatprep.subr.mxu0 0.0
    %194 = vmatpush1.msra.mxu0 0.0
    %195 = vmatprep.subr.mxu0 0.0
    %196 = vmatpush1.msra.mxu0 0.0
    %197 = vmatprep.subr.mxu0 0.0
    %198 = vmatpush1.msra.mxu0 0.0
    %199 = vmatprep.subr.mxu0 0.0
    %200 = vmatpush1.msra.mxu0 0.0
    %201 = vmatprep.subr.mxu0 0.0
    %202 = vmatpush1.msra.mxu0 0.0
    %203 = vmatprep.subr.mxu0 0.0
    %204 = vmatpush1.msra.mxu0 0.0
    %205 = vmatprep.subr.mxu0 0.0
    %206 = vmatpush1.msra.mxu0 0.0
    %207 = vmatprep.subr.mxu0 0.0
    %208 = vmatpush1.msra.mxu0 0.0
    %209 = vmatprep.subr.mxu0 0.0
    %210 = vmatpush1.msra.mxu0 0.0
    %211 = vmatprep.subr.mxu0 0.0
    %212 = vmatpush1.msra.mxu0 0.0
    %213 = vmatprep.subr.mxu0 0.0
    %214 = vmatpush1.msra.mxu0 0.0
    %215 = vmatprep.subr.mxu0 0.0
    %216 = vmatpush1.msra.mxu0 0.0
    %217 = vmatprep.subr.mxu0 0.0
    %218 = vmatpush1.msra.mxu0 0.0
    %219 = vmatprep.subr.mxu0 0.0
    %220 = vmatpush1.msra.mxu0 0.0
    %221 = vmatprep.subr.mxu0 0.0
    %222 = vmatpush1.msra.mxu0 0.0
    %223 = vmatprep.subr.mxu0 0.0
    %224 = vmatpush1.msra.mxu0 0.0
    %225 = vmatprep.subr.mxu0 0.0
    %226 = vmatpush1.msra.mxu0 0.0
    %227 = vmatprep.subr.mxu0 0.0
    %228 = vmatpush1.msra.mxu0 0.0
    %229 = vmatprep.subr.mxu0 0.0
    %230 = vmatpush1.msra.mxu0 0.0
    %231 = vmatprep.mubr.f32.mxu0 0.0
    %232 = vmatmul.mubr.f32.gmra.mrb[0].mxu0 %v165
    %v233 = vpop.f32.mrb[0].mxu0
    %v234 = vadd.f32 %v162, %v233
    %v235 = vpop.f32.mrb[0].mxu0
    %236 = vdwg.mxu0
    %237 = vadd.xlane.f32.xlu0 %v234
    %v238 = vpop.xlane.xlu0 %237
    %v239 = vmul.f32 %v234, %v234
    %240 = vadd.xlane.f32.xlu0 %v239
    %v241 = vpop.xlane.xlu0 %240
    %v242 = vmul.f32 %v238, 0.0078125
    %v243 = vmul.f32 %v241, 0.0078125
    %v244 = vmul.f32 %v242, %v242
    %v245 = vsub.f32 %v243, %v244
    %v246 = vsub.f32 %v234, %v242
    %v247 = vadd.f32 %v245, 1e-05
    %v248 = vrsqrt.pop %v247
    %v249 = vmul.f32 %v158, %v248
    %251 = vset.pattern.permute.xlu0 126
    %252 = vperm.xlu0 %251, %v249
    %v253 = vpop.permute.xlu0 %252
    %v255 = vmul.f32 %v246, %v253
    %256 = vset.pattern.permute.xlu0 127
    %257 = vperm.xlu0 %256, %v158
    %v258 = vpop.permute.xlu0 %257
    %v260 = vadd.f32 %v255, %v258
    %v261 = vmul.f32 %v260, 0.1
    %v262 = vmax.f32 %v260, %v261
    %v263 = vld [vmem:[#allocation2 + $0x10] sm:$0xff]
    %264 = vrot.lane.b32.xlu0 %v262, 1
    %v265 = vpop.permute.xlu0 %264
    %v266 = vsel %vm44, %v265, 0.0
    %267 = vrot.lane.b32.xlu0 %v262, 127
    %v268 = vpop.permute.xlu0 %267
    %v269 = vsel %vm45, %v268, 0.0
    %271 = vset.pattern.permute.xlu0 125
    %272 = vperm.xlu0 %271, %v263
    %v273 = vpop.permute.xlu0 %272
    %v275 = vsel %vm59, %v263, 0
    %277 = vmatprep.subr.mxu0 0.0
    %278 = vmatpush1.msra.mxu0 %v266
    %279 = vmatprep.subr.mxu0 0.0
    %280 = vmatpush1.msra.mxu0 %v262
    %281 = vmatprep.subr.mxu0 0.0
    %282 = vmatpush1.msra.mxu0 %v269
    %283 = vmatprep.subr.mxu0 0.0
    %284 = vmatpush1.msra.mxu0 0.0
    %285 = vmatprep.subr.mxu0 0.0
    %286 = vmatpush1.msra.mxu0 0.0
    %287 = vmatprep.subr.mxu0 0.0
    %288 = vmatpush1.msra.mxu0 0.0
    %289 = vmatprep.subr.mxu0 0.0
    %290 = vmatpush1.msra.mxu0 0.0
    %291 = vmatprep.subr.mxu0 0.0
    %292 = vmatpush1.msra.mxu0 0.0
    %293 = vmatprep.subr.mxu0 0.0
    %294 = vmatpush1.msra.mxu0 0.0
    %295 = vmatprep.subr.mxu0 0.0
    %296 = vmatpush1.msra.mxu0 0.0
    %297 = vmatprep.subr.mxu0 0.0
    %298 = vmatpush1.msra.mxu0 0.0
    %299 = vmatprep.subr.mxu0 0.0
    %300 = vmatpush1.msra.mxu0 0.0
    %301 = vmatprep.subr.mxu0 0.0
    %302 = vmatpush1.msra.mxu0 0.0
    %303 = vmatprep.subr.mxu0 0.0
    %304 = vmatpush1.msra.mxu0 0.0
    %305 = vmatprep.subr.mxu0 0.0
    %306 = vmatpush1.msra.mxu0 0.0
    %307 = vmatprep.subr.mxu0 0.0
    %308 = vmatpush1.msra.mxu0 0.0
    %309 = vmatprep.subr.mxu0 0.0
    %310 = vmatpush1.msra.mxu0 0.0
    %311 = vmatprep.subr.mxu0 0.0
    %312 = vmatpush1.msra.mxu0 0.0
    %313 = vmatprep.subr.mxu0 0.0
    %314 = vmatpush1.msra.mxu0 0.0
    %315 = vmatprep.subr.mxu0 0.0
    %316 = vmatpush1.msra.mxu0 0.0
    %317 = vmatprep.subr.mxu0 0.0
    %318 = vmatpush1.msra.mxu0 0.0
    %319 = vmatprep.subr.mxu0 0.0
    %320 = vmatpush1.msra.mxu0 0.0
    %321 = vmatprep.subr.mxu0 0.0
    %322 = vmatpush1.msra.mxu0 0.0
    %323 = vmatprep.subr.mxu0 0.0
    %324 = vmatpush1.msra.mxu0 0.0
    %325 = vmatprep.subr.mxu0 0.0
    %326 = vmatpush1.msra.mxu0 0.0
    %327 = vmatprep.subr.mxu0 0.0
    %328 = vmatpush1.msra.mxu0 0.0
    %329 = vmatprep.subr.mxu0 0.0
    %330 = vmatpush1.msra.mxu0 0.0
    %331 = vmatprep.subr.mxu0 0.0
    %332 = vmatpush1.msra.mxu0 0.0
    %333 = vmatprep.subr.mxu0 0.0
    %334 = vmatpush1.msra.mxu0 0.0
    %335 = vmatprep.subr.mxu0 0.0
    %336 = vmatpush1.msra.mxu0 0.0
    %337 = vmatprep.subr.mxu0 0.0
    %338 = vmatpush1.msra.mxu0 0.0
    %339 = vmatprep.subr.mxu0 0.0
    %340 = vmatpush1.msra.mxu0 0.0
    %341 = vmatprep.mubr.f32.mxu0 0.0
    %342 = vmatmul.mubr.f32.gmra.mrb[0].mxu0 %v275
    %v343 = vpop.f32.mrb[0].mxu0
    %v344 = vadd.f32 %v273, %v343
    %v345 = vpop.f32.mrb[0].mxu0
    %346 = vdwg.mxu0
    %347 = vadd.xlane.f32.xlu0 %v344
    %v348 = vpop.xlane.xlu0 %347
    %v349 = vmul.f32 %v344, %v344
    %350 = vadd.xlane.f32.xlu0 %v349
    %v351 = vpop.xlane.xlu0 %350
    %v352 = vmul.f32 %v348, 0.0078125
    %v353 = vmul.f32 %v351, 0.0078125
    %v354 = vmul.f32 %v352, %v352
    %v355 = vsub.f32 %v353, %v354
    %v356 = vsub.f32 %v344, %v352
    %v357 = vadd.f32 %v355, 1e-05
    %v358 = vrsqrt.pop %v357
    %v359 = vmul.f32 %v263, %v358
    %361 = vset.pattern.permute.xlu0 126
    %362 = vperm.xlu0 %361, %v359
    %v363 = vpop.permute.xlu0 %362
    %v365 = vmul.f32 %v356, %v363
    %366 = vset.pattern.permute.xlu0 127
    %367 = vperm.xlu0 %366, %v263
    %v368 = vpop.permute.xlu0 %367
    %v370 = vadd.f32 %v365, %v368
    %v371 = vmul.f32 %v370, 0.1
    %v372 = vmax.f32 %v370, %v371
    %373 = vrot.lane.b32.xlu0 %v372, 16
    %v374 = vpop.permute.xlu0 %373
    %v375 = vmax.f32 %v372, %v374
    %376 = vrot.lane.b32.xlu0 %v375, 32
    %v377 = vpop.permute.xlu0 %376
    %v378 = vmax.f32 %v375, %v377
    %379 = vrot.lane.b32.xlu0 %v378, 64
    %v380 = vpop.permute.xlu0 %379
    %v381 = vmax.f32 %v378, %v380
    %v382 = vsub.f32 %v372, %v381
    %v383 = vmul.f32 %v382, 1.442695
    %v384 = vpow.pop %v383
    %v385 = vld [vmem:[#allocation2 + $0x30] sm:$0xff]
    %v386 = vld [vmem:[#allocation2 + $0x38] sm:$0xff]
    %v387 = vld [vmem:[#allocation2 + $0x40] sm:$0xff]
    %v388 = vld [vmem:[#allocation2 + $0x48] sm:$0xff]
    %v389 = vld [vmem:[#allocation2 + $0x50] sm:$0xff]
    %v390 = vld [vmem:[#allocation2 + $0x58] sm:$0xff]
    %v391 = vld [vmem:[#allocation2 + $0x60] sm:$0xff]
    %v392 = vld [vmem:[#allocation2 + $0x68] sm:$0xff]
    %v393 = vld [vmem:[#allocation2 + $0x70] sm:$0xff]
    %v394 = vld [vmem:[#allocation2 + $0x78] sm:$0xff]
    %v395 = vld [vmem:[#allocation2 + $0x80] sm:$0xff]
    %v396 = vld [vmem:[#allocation2 + $0x88] sm:$0xff]
    %v397 = vld [vmem:[#allocation2 + $0x90] sm:$0xff]
    %v398 = vld [vmem:[#allocation2 + $0x98] sm:$0xff]
    %v399 = vld [vmem:[#allocation2 + $0xa0] sm:$0xff]
    %v400 = vld [vmem:[#allocation2 + $0xa8] sm:$0xff]
    %401 = vmatprep.subr.mxu0 0.0
    %402 = vmatpush1.msra.mxu0 %v385
    %403 = vmatprep.subr.mxu0 0.0
    %404 = vmatpush1.msra.mxu0 %v386
    %405 = vmatprep.subr.mxu0 0.0
    %406 = vmatpush1.msra.mxu0 %v387
    %407 = vmatprep.subr.mxu0 0.0
    %408 = vmatpush1.msra.mxu0 %v388
    %409 = vmatprep.subr.mxu0 0.0
    %410 = vmatpush1.msra.mxu0 %v389
    %411 = vmatprep.subr.mxu0 0.0
    %412 = vmatpush1.msra.mxu0 %v390
    %413 = vmatprep.subr.mxu0 0.0
    %414 = vmatpush1.msra.mxu0 %v391
    %415 = vmatprep.subr.mxu0 0.0
    %416 = vmatpush1.msra.mxu0 %v392
    %417 = vmatprep.subr.mxu0 0.0
    %418 = vmatpush1.msra.mxu0 %v393
    %419 = vmatprep.subr.mxu0 0.0
    %420 = vmatpush1.msra.mxu0 %v394
    %421 = vmatprep.subr.mxu0 0.0
    %422 = vmatpush1.msra.mxu0 %v395
    %423 = vmatprep.subr.mxu0 0.0
    %424 = vmatpush1.msra.mxu0 %v396
    %425 = vmatprep.subr.mxu0 0.0
    %426 = vmatpush1.msra.mxu0 %v397
    %427 = vmatprep.subr.mxu0 0.0
    %428 = vmatpush1.msra.mxu0 %v398
    %429 = vmatprep.subr.mxu0 0.0
    %430 = vmatpush1.msra.mxu0 %v399
    %431 = vmatprep.subr.mxu0 0.0
    %432 = vmatpush1.msra.mxu0 %v400
    %433 = vmatprep.subr.mxu0 0.0
    %434 = vmatpush1.msra.mxu0 0.0
    %435 = vmatprep.subr.mxu0 0.0
    %436 = vmatpush1.msra.mxu0 0.0
    %437 = vmatprep.subr.mxu0 0.0
    %438 = vmatpush1.msra.mxu0 0.0
    %439 = vmatprep.subr.mxu0 0.0
    %440 = vmatpush1.msra.mxu0 0.0
    %441 = vmatprep.subr.mxu0 0.0
    %442 = vmatpush1.msra.mxu0 0.0
    %443 = vmatprep.subr.mxu0 0.0
    %444 = vmatpush1.msra.mxu0 0.0
    %445 = vmatprep.subr.mxu0 0.0
    %446 = vmatpush1.msra.mxu0 0.0
    %447 = vmatprep.subr.mxu0 0.0
    %448 = vmatpush1.msra.mxu0 0.0
    %449 = vmatprep.subr.mxu0 0.0
    %450 = vmatpush1.msra.mxu0 0.0
    %451 = vmatprep.subr.mxu0 0.0
    %452 = vmatpush1.msra.mxu0 0.0
    %453 = vmatprep.subr.mxu0 0.0
    %454 = vmatpush1.msra.mxu0 0.0
    %455 = vmatprep.subr.mxu0 0.0
    %456 = vmatpush1.msra.mxu0 0.0
    %457 = vmatprep.subr.mxu0 0.0
    %458 = vmatpush1.msra.mxu0 0.0
    %459 = vmatprep.subr.mxu0 0.0
    %460 = vmatpush1.msra.mxu0 0.0
    %461 = vmatprep.subr.mxu0 0.0
    %462 = vmatpush1.msra.mxu0 0.0
    %463 = vmatprep.subr.mxu0 0.0
    %464 = vmatpush1.msra.mxu0 0.0
    %465 = vmatprep.mubr.f32.mxu0 0.0
    %466 = vmatmul.mubr.f32.gmra.mrb[0].mxu0 %v384
    %v467 = vpop.f32.mrb[0].mxu0
    %v468 = vadd.f32 0.0, %v467
    %v469 = vpop.f32.mrb[0].mxu0
    %470 = vdwg.mxu0
    %v471 = vrcp.pop %v468
    %v472 = vmul.f32 %v468, %v471
    %v473 = vsub.f32 2.0, %v472
    %v474 = vmul.f32 %v471, %v473
    %v475 = vmul.f32 %v384, %v474
    %v476 = vld [vmem:[#allocation2 + $0x18] sm:$0xff]
    %478 = vset.pattern.permute.xlu0 125
    %479 = vperm.xlu0 %478, %v476
    %v480 = vpop.permute.xlu0 %479
    %v482 = vsel %vm164, %v476, 0
    %484 = vmatprep.subr.mxu0 0.0
    %485 = vmatpush1.msra.mxu0 %v46
    %486 = vmatprep.subr.mxu0 0.0
    %487 = vmatpush1.msra.mxu0 0.0
    %488 = vmatprep.subr.mxu0 0.0
    %489 = vmatpush1.msra.mxu0 0.0
    %490 = vmatprep.subr.mxu0 0.0
    %491 = vmatpush1.msra.mxu0 0.0
    %492 = vmatprep.subr.mxu0 0.0
    %493 = vmatpush1.msra.mxu0 0.0
    %494 = vmatprep.subr.mxu0 0.0
    %495 = vmatpush1.msra.mxu0 0.0
    %496 = vmatprep.subr.mxu0 0.0
    %497 = vmatpush1.msra.mxu0 0.0
    %498 = vmatprep.subr.mxu0 0.0
    %499 = vmatpush1.msra.mxu0 0.0
    %500 = vmatprep.subr.mxu0 0.0
    %501 = vmatpush1.msra.mxu0 0.0
    %502 = vmatprep.subr.mxu0 0.0
    %503 = vmatpush1.msra.mxu0 0.0
    %504 = vmatprep.subr.mxu0 0.0
    %505 = vmatpush1.msra.mxu0 0.0
    %506 = vmatprep.subr.mxu0 0.0
    %507 = vmatpush1.msra.mxu0 0.0
    %508 = vmatprep.subr.mxu0 0.0
    %509 = vmatpush1.msra.mxu0 0.0
    %510 = vmatprep.subr.mxu0 0.0
    %511 = vmatpush1.msra.mxu0 0.0
    %512 = vmatprep.subr.mxu0 0.0
    %513 = vmatpush1.msra.mxu0 0.0
    %514 = vmatprep.subr.mxu0 0.0
    %515 = vmatpush1.msra.mxu0 0.0
    %516 = vmatprep.subr.mxu0 0.0
    %517 = vmatpush1.msra.mxu0 0.0
    %518 = vmatprep.subr.mxu0 0.0
    %519 = vmatpush1.msra.mxu0 0.0
    %520 = vmatprep.subr.mxu0 0.0
    %521 = vmatpush1.msra.mxu0 0.0
    %522 = vmatprep.subr.mxu0 0.0
    %523 = vmatpush1.msra.mxu0 0.0
    %524 = vmatprep.subr.mxu0 0.0
    %525 = vmatpush1.msra.mxu0 0.0
    %526 = vmatprep.subr.mxu0 0.0
    %527 = vmatpush1.msra.mxu0 0.0
    %528 = vmatprep.subr.mxu0 0.0
    %529 = vmatpush1.msra.mxu0 0.0
    %530 = vmatprep.subr.mxu0 0.0
    %531 = vmatpush1.msra.mxu0 0.0
    %532 = vmatprep.subr.mxu0 0.0
    %533 = vmatpush1.msra.mxu0 0.0
    %534 = vmatprep.subr.mxu0 0.0
    %535 = vmatpush1.msra.mxu0 0.0
    %536 = vmatprep.subr.mxu0 0.0
    %537 = vmatpush1.msra.mxu0 0.0
    %538 = vmatprep.subr.mxu0 0.0
    %539 = vmatpush1.msra.mxu0 0.0
    %540 = vmatprep.subr.mxu0 0.0
    %541 = vmatpush1.msra.mxu0 0.0
    %542 = vmatprep.subr.mxu0 0.0
    %543 = vmatpush1.msra.mxu0 0.0
    %544 = vmatprep.subr.mxu0 0.0
    %545 = vmatpush1.msra.mxu0 0.0
    %546 = vmatprep.subr.mxu0 0.0
    %547 = vmatpush1.msra.mxu0 0.0
    %548 = vmatprep.mubr.f32.mxu0 0.0
    %549 = vmatmul.mubr.f32.gmra.mrb[0].mxu0 %v482
    %v550 = vpop.f32.mrb[0].mxu0
    %v551 = vadd.f32 %v480, %v550
    %v552 = vpop.f32.mrb[0].mxu0
    %553 = vdwg.mxu0
    %554 = vadd.xlane.f32.xlu0 %v551
    %v555 = vpop.xlane.xlu0 %554
    %v556 = vmul.f32 %v551, %v551
    %557 = vadd.xlane.f32.xlu0 %v556
    %v558 = vpop.xlane.xlu0 %557
    %v559 = vmul.f32 %v555, 0.0078125
    %v560 = vmul.f32 %v558, 0.0078125
    %v561 = vmul.f32 %v559, %v559
    %v562 = vsub.f32 %v560, %v561
    %v563 = vsub.f32 %v551, %v559
    %v564 = vadd.f32 %v562, 1e-05
    %v565 = vrsqrt.pop %v564
    %v566 = vmul.f32 %v476, %v565
    %568 = vset.pattern.permute.xlu0 126
    %569 = vperm.xlu0 %568, %v566
    %v570 = vpop.permute.xlu0 %569
    %v572 = vmul.f32 %v563, %v570
    %573 = vset.pattern.permute.xlu0 127
    %574 = vperm.xlu0 %573, %v476
    %v575 = vpop.permute.xlu0 %574
    %v577 = vadd.f32 %v572, %v575
    %v578 = vmul.f32 %v577, 0.1
    %v579 = vmax.f32 %v577, %v578
    %v580 = vld [vmem:[#allocation2 + $0x20] sm:$0xff]
    %582 = vset.pattern.permute.xlu0 125
    %583 = vperm.xlu0 %582, %v580
    %v584 = vpop.permute.xlu0 %583
    %v586 = vsel %vm164, %v580, 0
    %588 = vmatprep.subr.mxu0 0.0
    %589 = vmatpush1.msra.mxu0 %v579
    %590 = vmatprep.subr.mxu0 0.0
    %591 = vmatpush1.msra.mxu0 0.0
    %592 = vmatprep.subr.mxu0 0.0
    %593 = vmatpush1.msra.mxu0 0.0
    %594 = vmatprep.subr.mxu0 0.0
    %595 = vmatpush1.msra.mxu0 0.0
    %596 = vmatprep.subr.mxu0 0.0
    %597 = vmatpush1.msra.mxu0 0.0
    %598 = vmatprep.subr.mxu0 0.0
    %599 = vmatpush1.msra.mxu0 0.0
    %600 = vmatprep.subr.mxu0 0.0
    %601 = vmatpush1.msra.mxu0 0.0
    %602 = vmatprep.subr.mxu0 0.0
    %603 = vmatpush1.msra.mxu0 0.0
    %604 = vmatprep.subr.mxu0 0.0
    %605 = vmatpush1.msra.mxu0 0.0
    %606 = vmatprep.subr.mxu0 0.0
    %607 = vmatpush1.msra.mxu0 0.0
    %608 = vmatprep.subr.mxu0 0.0
    %609 = vmatpush1.msra.mxu0 0.0
    %610 = vmatprep.subr.mxu0 0.0
    %611 = vmatpush1.msra.mxu0 0.0
    %612 = vmatprep.subr.mxu0 0.0
    %613 = vmatpush1.msra.mxu0 0.0
    %614 = vmatprep.subr.mxu0 0.0
    %615 = vmatpush1.msra.mxu0 0.0
    %616 = vmatprep.subr.mxu0 0.0
    %617 = vmatpush1.msra.mxu0 0.0
    %618 = vmatprep.subr.mxu0 0.0
    %619 = vmatpush1.msra.mxu0 0.0
    %620 = vmatprep.subr.mxu0 0.0
    %621 = vmatpush1.msra.mxu0 0.0
    %622 = vmatprep.subr.mxu0 0.0
    %623 = vmatpush1.msra.mxu0 0.0
    %624 = vmatprep.subr.mxu0 0.0
    %625 = vmatpush1.msra.mxu0 0.0
    %626 = vmatprep.subr.mxu0 0.0
    %627 = vmatpush1.msra.mxu0 0.0
    %628 = vmatprep.subr.mxu0 0.0
    %629 = vmatpush1.msra.mxu0 0.0
    %630 = vmatprep.subr.mxu0 0.0
    %631 = vmatpush1.msra.mxu0 0.0
    %632 = vmatprep.subr.mxu0 0.0
    %633 = vmatpush1.msra.mxu0 0.0
    %634 = vmatprep.subr.mxu0 0.0
    %635 = vmatpush1.msra.mxu0 0.0
    %636 = vmatprep.subr.mxu0 0.0
    %637 = vmatpush1.msra.mxu0 0.0
    %638 = vmatprep.subr.mxu0 0.0
    %639 = vmatpush1.msra.mxu0 0.0
    %640 = vmatprep.subr.mxu0 0.0
    %641 = vmatpush1.msra.mxu0 0.0
    %642 = vmatprep.subr.mxu0 0.0
    %643 = vmatpush1.msra.mxu0 0.0
    %644 = vmatprep.subr.mxu0 0.0
    %645 = vmatpush1.msra.mxu0 0.0
    %646 = vmatprep.subr.mxu0 0.0
    %647 = vmatpush1.msra.mxu0 0.0
    %648 = vmatprep.subr.mxu0 0.0
    %649 = vmatpush1.msra.mxu0 0.0
    %650 = vmatprep.subr.mxu0 0.0
    %651 = vmatpush1.msra.mxu0 0.0
    %652 = vmatprep.mubr.f32.mxu0 0.0
    %653 = vmatmul.mubr.f32.gmra.mrb[0].mxu0 %v586
    %v654 = vpop.f32.mrb[0].mxu0
    %v655 = vadd.f32 %v584, %v654
    %v656 = vpop.f32.mrb[0].mxu0
    %657 = vdwg.mxu0
    %658 = vadd.xlane.f32.xlu0 %v655
    %v659 = vpop.xlane.xlu0 %658
    %v660 = vmul.f32 %v655, %v655
    %661 = vadd.xlane.f32.xlu0 %v660
    %v662 = vpop.xlane.xlu0 %661
    %v663 = vmul.f32 %v659, 0.0078125
    %v664 = vmul.f32 %v662, 0.0078125
    %v665 = vmul.f32 %v663, %v663
    %v666 = vsub.f32 %v664, %v665
    %v667 = vsub.f32 %v655, %v663
    %v668 = vadd.f32 %v666, 1e-05
    %v669 = vrsqrt.pop %v668
    %v670 = vmul.f32 %v580, %v669
    %672 = vset.pattern.permute.xlu0 126
    %673 = vperm.xlu0 %672, %v670
    %v674 = vpop.permute.xlu0 %673
    %v676 = vmul.f32 %v667, %v674
    %677 = vset.pattern.permute.xlu0 127
    %678 = vperm.xlu0 %677, %v580
    %v679 = vpop.permute.xlu0 %678
    %v681 = vadd.f32 %v676, %v679
    %v682 = vmul.f32 %v681, 0.1
    %v683 = vmax.f32 %v681, %v682
    %v684 = vld [vmem:[%s1] sm:$0xff]
    %v685 = vadd.f32 %v684, %v683
    %686 = vst [vmem:[%s4] sm:$0xff] %v685
    %v687 = vld [vmem:[#allocation2 + $0x28] sm:$0xff]
    %v688 = vld [vmem:[#allocation2 + $0xb0] sm:$0xff]
    %v689 = vld [vmem:[#allocation2 + $0xb8] sm:$0xff]
    %v690 = vld [vmem:[#allocation2 + $0xc0] sm:$0xff]
    %v691 = vld [vmem:[#allocation2 + $0xc8] sm:$0xff]
    %v692 = vld [vmem:[#allocation2 + $0xd0] sm:$0xff]
    %v693 = vld [vmem:[#allocation2 + $0xd8] sm:$0xff]
    %v694 = vld [vmem:[#allocation2 + $0xe0] sm:$0xff]
    %v695 = vld [vmem:[#allocation2 + $0xe8] sm:$0xff]
    %v696 = vld [vmem:[#allocation2 + $0xf0] sm:$0xff]
    %v697 = vld [vmem:[#allocation2 + $0xf8] sm:$0xff]
    %v698 = vld [vmem:[#allocation2 + $0x100] sm:$0xff]
    %v699 = vld [vmem:[#allocation2 + $0x108] sm:$0xff]
    %v700 = vld [vmem:[#allocation2 + $0x110] sm:$0xff]
    %v701 = vld [vmem:[#allocation2 + $0x118] sm:$0xff]
    %v702 = vld [vmem:[#allocation2 + $0x120] sm:$0xff]
    %v703 = vld [vmem:[#allocation2 + $0x128] sm:$0xff]
    %v704 = vmul.f32 %v687, %v475
    %v705 = vmul.f32 %v704, %v683
    %706 = vmatprep.subr.mxu0 0.0
    %707 = vmatpush1.msra.mxu0 %v688
    %708 = vmatprep.subr.mxu0 0.0
    %709 = vmatpush1.msra.mxu0 %v689
    %710 = vmatprep.subr.mxu0 0.0
    %711 = vmatpush1.msra.mxu0 %v690
    %712 = vmatprep.subr.mxu0 0.0
    %713 = vmatpush1.msra.mxu0 %v691
    %714 = vmatprep.subr.mxu0 0.0
    %715 = vmatpush1.msra.mxu0 %v692
    %716 = vmatprep.subr.mxu0 0.0
    %717 = vmatpush1.msra.mxu0 %v693
    %718 = vmatprep.subr.mxu0 0.0
    %719 = vmatpush1.msra.mxu0 %v694
    %720 = vmatprep.subr.mxu0 0.0
    %721 = vmatpush1.msra.mxu0 %v695
    %722 = vmatprep.subr.mxu0 0.0
    %723 = vmatpush1.msra.mxu0 %v696
    %724 = vmatprep.subr.mxu0 0.0
    %725 = vmatpush1.msra.mxu0 %v697
    %726 = vmatprep.subr.mxu0 0.0
    %727 = vmatpush1.msra.mxu0 %v698
    %728 = vmatprep.subr.mxu0 0.0
    %729 = vmatpush1.msra.mxu0 %v699
    %730 = vmatprep.subr.mxu0 0.0
    %731 = vmatpush1.msra.mxu0 %v700
    %732 = vmatprep.subr.mxu0 0.0
    %733 = vmatpush1.msra.mxu0 %v701
    %734 = vmatprep.subr.mxu0 0.0
    %735 = vmatpush1.msra.mxu0 %v702
    %736 = vmatprep.subr.mxu0 0.0
    %737 = vmatpush1.msra.mxu0 %v703
    %738 = vmatprep.subr.mxu0 0.0
    %739 = vmatpush1.msra.mxu0 0.0
    %740 = vmatprep.subr.mxu0 0.0
    %741 = vmatpush1.msra.mxu0 0.0
    %742 = vmatprep.subr.mxu0 0.0
    %743 = vmatpush1.msra.mxu0 0.0
    %744 = vmatprep.subr.mxu0 0.0
    %745 = vmatpush1.msra.mxu0 0.0
    %746 = vmatprep.subr.mxu0 0.0
    %747 = vmatpush1.msra.mxu0 0.0
    %748 = vmatprep.subr.mxu0 0.0
    %749 = vmatpush1.msra.mxu0 0.0
    %750 = vmatprep.subr.mxu0 0.0
    %751 = vmatpush1.msra.mxu0 0.0
    %752 = vmatprep.subr.mxu0 0.0
    %753 = vmatpush1.msra.mxu0 0.0
    %754 = vmatprep.subr.mxu0 0.0
    %755 = vmatpush1.msra.mxu0 0.0
    %756 = vmatprep.subr.mxu0 0.0
    %757 = vmatpush1.msra.mxu0 0.0
    %758 = vmatprep.subr.mxu0 0.0
    %759 = vmatpush1.msra.mxu0 0.0
    %760 = vmatprep.subr.mxu0 0.0
    %761 = vmatpush1.msra.mxu0 0.0
    %762 = vmatprep.subr.mxu0 0.0
    %763 = vmatpush1.msra.mxu0 0.0
    %764 = vmatprep.subr.mxu0 0.0
    %765 = vmatpush1.msra.mxu0 0.0
    %766 = vmatprep.subr.mxu0 0.0
    %767 = vmatpush1.msra.mxu0 0.0
    %768 = vmatprep.subr.mxu0 0.0
    %769 = vmatpush1.msra.mxu0 0.0
    %770 = vmatprep.mubr.f32.mxu0 0.0
    %771 = vmatmul.mubr.f32.gmra.mrb[0].mxu0 %v705
    %v772 = vpop.f32.mrb[0].mxu0
    %v773 = vadd.f32 0.0, %v772
    %v774 = vpop.f32.mrb[0].mxu0
    %775 = vdwg.mxu0
    %776 = vst [vmem:[%s3] sm:$0xff] %v773
    // Predicated region
    $region18: #{forward.1} parent=1 // pred_check
      _
    $region19: #{forward.1} parent=1 // pred_check_branch
      %778 = sbr.rel (0) target = $region21
    $region20: #{forward.1} parent=1 // pred_region
      _
    $region21: #{forward.1} parent=1 // pred_fallthru
      _
    // Predicated region
    $region22: #{forward.1} parent=1 // pred_check
      _
    $region23: #{forward.1} parent=1 // pred_check_branch
      %780 = sbr.rel (0) target = $region25
    $region24: #{forward.1} parent=1 // pred_region
      _
    $region25: #{forward.1} parent=1 // pred_fallthru
      _
    // Predicated region
    $region26: #{forward.1} parent=1 // pred_check
      _
    $region27: #{forward.1} parent=1 // pred_check_branch
      %782 = sbr.rel (0) target = $region29
    $region28: #{forward.1} parent=1 // pred_region
      _
    $region29: #{forward.1} parent=1 // pred_fallthru
      _
    // Predicated region
    $region30: #{forward.1} parent=1 // pred_check
      _
    $region31: #{forward.1} parent=1 // pred_check_branch
      %784 = sbr.rel (0) target = $region33
    $region32: #{forward.1} parent=1 // pred_region
      _
    $region33: #{forward.1} parent=1 // pred_fallthru
      _
    %785 = vsyncpa [#allocation3], 1

</llo_original>
